<compile_context>
chip_gen: v7x
topology: tpu7x:2x2x1
jax: 0.10.0
libtpu: 0.0.40
codegen_flags: <defaults>
</compile_context>

<pallas_src>
import functools

import jax
import jax.numpy as jnp
from jax.experimental import pallas as pl
from jax.experimental.pallas import tpu as pltpu


# ----------------------------- helpers --------------------------------------

def _round_up(n, m):
    return ((n + m - 1) // m) * m


def _pad2d(a, rows, cols):
    return jnp.pad(a, ((0, rows - a.shape[0]), (0, cols - a.shape[1])))


@functools.lru_cache(maxsize=1)
def _vmem_budget_bytes():
    # ~3/4 of physical VMEM per generation (v5e/v6e: 128 MiB, v7x: 64 MiB).
    try:
        cap = pltpu.get_tpu_info().vmem_capacity_bytes
    except Exception:
        cap = 64 * 1024 * 1024
    return int(cap * 3 // 4)


def _cparams(dimension_semantics):
    return pltpu.CompilerParams(
        dimension_semantics=dimension_semantics,
        vmem_limit_bytes=_vmem_budget_bytes())


def _choose_tiles(n):
    """Row / contraction tiles for the tiled (large-graph) path.

    Pads N UP to a multiple of the chosen row tile (instead of shrinking the
    tile until it divides N), caps the row tile at 1024, and prefers >=2 row
    blocks so the 'parallel' axis keeps both v7x TensorCores busy.
    """
    n128 = _round_up(max(n, 1), 128)
    tm = min(1024, n128)
    n_pad = _round_up(n128, tm)
    if n_pad // tm == 1 and n_pad >= 256:
        tm = n_pad // 2                     # >=2 row blocks (v7x megacore)
    tk = 512 if n_pad % 512 == 0 else (256 if n_pad % 256 == 0 else 128)
    tk = min(tk, n_pad)
    return n_pad, tm, tk


# ----------------------------- kernels --------------------------------------

def fused_small_kernel(a_ref, x_ref, w1_ref, b1_ref, w2_ref, b2_ref,
                       p_ref, wfc_ref, bfc_ref, o_ref):
    """Whole forward in one launch, everything VMEM-resident (small graphs).

    out = (pool @ (A @ (relu(A @ (x@W1) + b1) @ W2) + b2)) @ Wfc + bfc
    bf16 MXU operands, f32 accumulation everywhere, zero intermediate HBM.
    """
    bf16 = jnp.bfloat16
    xw1 = jnp.dot(x_ref[...], w1_ref[...], preferred_element_type=jnp.float32)
    h1 = jnp.dot(a_ref[...], xw1.astype(bf16),
                 preferred_element_type=jnp.float32)
    # NOTE: padded (all-zero) rows pick up bias / relu(bias) garbage; harmless
    # only because A_hat's and pool's padded columns are zero.
    h1 = jnp.maximum(h1 + b1_ref[...], 0.0)
    # TODO(synk): F.dropout(training=True) would need pltpu.prng_random_bits
    # masking here; eval mode (training=False) is identity.
    xw2 = jnp.dot(h1.astype(bf16), w2_ref[...],
                  preferred_element_type=jnp.float32)
    h2 = jnp.dot(a_ref[...], xw2.astype(bf16),
                 preferred_element_type=jnp.float32) + b2_ref[...]
    pooled = jnp.dot(p_ref[...], h2, preferred_element_type=jnp.float32)
    o_ref[...] = (jnp.dot(pooled, wfc_ref[...].astype(jnp.float32),
                          preferred_element_type=jnp.float32) + bfc_ref[...])


def transform_kernel(x_ref, w_ref, o_ref):
    # xw = x @ W  (W pinned in VMEM via constant index_map)
    o_ref[...] = jnp.dot(x_ref[...], w_ref[...],
                         preferred_element_type=jnp.float32).astype(o_ref.dtype)


def make_propagate_kernel(apply_relu, fuse_w2, xw_resident, tk):
    """out = [ (relu)(A_hat @ xw + b) [@ W2] ] with f32 accumulation.

    When `xw_resident`, xw_ref is the full (N, h) VMEM buffer (fetched once)
    and is sliced per contraction step; otherwise it is a (tk, h) block.
    """
    def kernel(a_ref, xw_ref, b_ref, *rest):
        if fuse_w2:
            w2_ref, o_ref, acc_ref = rest
        else:
            o_ref, acc_ref = rest
        k = pl.program_id(1)

        @pl.when(k == 0)
        def _():
            acc_ref[...] = jnp.zeros_like(acc_ref)

        if xw_resident:
            start = pl.multiple_of(k * tk, tk)
            xw = xw_ref[pl.ds(start, tk), :]
        else:
            xw = xw_ref[...]
        acc_ref[...] += jnp.dot(a_ref[...], xw,
                                preferred_element_type=jnp.float32)

        @pl.when(k == pl.num_programs(1) - 1)
        def _():
            h = acc_ref[...] + b_ref[...]          # f32 bias add
            if apply_relu:
                h = jnp.maximum(h, 0.0)            # f32 ReLU
            # TODO(synk): dropout(training=True) mask would go here; eval = id.
            if fuse_w2:
                h = jnp.dot(h.astype(jnp.bfloat16), w2_ref[...],
                            preferred_element_type=jnp.float32)
            o_ref[...] = h.astype(o_ref.dtype)

    return kernel


def pool_fc_kernel(p_ref, h_ref, wfc_ref, bfc_ref, o_ref, acc_ref):
    # pooled = pool @ h2 (accumulated over N blocks); out = pooled @ Wfc + bfc
    k = pl.program_id(0)

    @pl.when(k == 0)
    def _():
        acc_ref[...] = jnp.zeros_like(acc_ref)

    acc_ref[...] += jnp.dot(p_ref[...], h_ref[...].astype(jnp.float32),
                            preferred_element_type=jnp.float32)

    @pl.when(k == pl.num_programs(0) - 1)
    def _():
        # keep pooled means in f32 for the tiny FC matmul (free precision)
        o_ref[...] = (jnp.dot(acc_ref[...], wfc_ref[...].astype(jnp.float32),
                              preferred_element_type=jnp.float32)
                      + bfc_ref[...])


# ----------------------------- wrappers -------------------------------------

def transform(x, w, *, tm):
    n, f = x.shape
    h = w.shape[1]
    return pl.pallas_call(
        transform_kernel,
        out_shape=jax.ShapeDtypeStruct((n, h), jnp.bfloat16),
        grid=(n // tm,),
        in_specs=[pl.BlockSpec((tm, f), lambda i: (i, 0)),
                  pl.BlockSpec((f, h), lambda i: (0, 0))],     # W resident
        out_specs=pl.BlockSpec((tm, h), lambda i: (i, 0)),
        compiler_params=_cparams(("parallel",)),
    )(x, w)


def propagate(a_hat, xw, b, *, relu, tm, tk, fuse_w2=False, w2=None):
    n = a_hat.shape[0]
    h_in = xw.shape[1]
    h_out = w2.shape[1] if fuse_w2 else h_in

    # Decide whether xw can be fully VMEM-resident (per-generation budget;
    # count 2x for double buffering to be safe across Pallas versions).
    budget = _vmem_budget_bytes()
    fixed = (2 * tm * tk * 2            # A_hat tiles (double buffered)
             + 2 * tm * h_out * 2       # output tiles
             + tm * h_in * 4            # f32 accumulator
             + 2 * h_in * h_out * 2     # resident W2 (if fused)
             + 2 * h_in * 4)            # bias
    xw_resident = (2 * n * h_in * 2 + fixed) <= budget

    kernel = make_propagate_kernel(relu, fuse_w2, xw_resident, tk)

    if xw_resident:
        xw_spec = pl.BlockSpec((n, h_in), lambda i, k: (0, 0))      # fetched once
    else:
        xw_spec = pl.BlockSpec((tk, h_in), lambda i, k: (k, 0))

    in_specs = [pl.BlockSpec((tm, tk), lambda i, k: (i, k)),
                xw_spec,
                pl.BlockSpec((1, h_in), lambda i, k: (0, 0))]       # bias resident
    args = [a_hat, xw, b]
    if fuse_w2:
        in_specs.append(pl.BlockSpec((h_in, h_out), lambda i, k: (0, 0)))
        args.append(w2)

    return pl.pallas_call(
        kernel,
        out_shape=jax.ShapeDtypeStruct((n, h_out), jnp.bfloat16),
        grid=(n // tm, n // tk),
        in_specs=in_specs,
        out_specs=pl.BlockSpec((tm, h_out), lambda i, k: (i, 0)),
        scratch_shapes=[pltpu.VMEM((tm, h_in), jnp.float32)],
        compiler_params=_cparams(("parallel", "arbitrary")),
    )(*args)


def pool_fc(pool_mat, h2, wfc, bfc, *, tk):
    gp, n = pool_mat.shape
    hp = h2.shape[1]
    cp = wfc.shape[1]
    return pl.pallas_call(
        pool_fc_kernel,
        out_shape=jax.ShapeDtypeStruct((gp, cp), jnp.float32),
        grid=(n // tk,),
        in_specs=[pl.BlockSpec((gp, tk), lambda k: (0, k)),
                  pl.BlockSpec((tk, hp), lambda k: (k, 0)),
                  pl.BlockSpec((hp, cp), lambda k: (0, 0)),
                  pl.BlockSpec((1, cp), lambda k: (0, 0))],
        out_specs=pl.BlockSpec((gp, cp), lambda k: (0, 0)),
        scratch_shapes=[pltpu.VMEM((gp, hp), jnp.float32)],
        compiler_params=_cparams(("arbitrary",)),
    )(pool_mat, h2, wfc, bfc)


def gcn_forward(a_hat, x, w1, b1, w2, b2, pool_mat, wfc, bfc,
                force_tiled=False):
    """Full GCNModel forward. Returns (num_graphs, num_classes) float32."""
    n, f_in = x.shape
    h1w = w1.shape[1]                 # 128
    h2w = w2.shape[1]                 # 64
    g, c = pool_mat.shape[0], wfc.shape[1]

    # --- pad to MXU/lane-friendly shapes -------------------------------------
    h1_pad = _round_up(h1w, 128)
    h2_pad = _round_up(h2w, 128)
    c_pad = _round_up(c, 128)
    g_pad = _round_up(g, 8)
    n_pad, tm, tk = _choose_tiles(n)

    bf16 = jnp.bfloat16
    a_p = _pad2d(a_hat, n_pad, n_pad).astype(bf16)
    x_p = _pad2d(x, n_pad, f_in).astype(bf16)
    w1_p = _pad2d(w1, f_in, h1_pad).astype(bf16)
    b1_p = _pad2d(b1, 1, h1_pad).astype(jnp.float32)
    w2_p = _pad2d(w2, h1_pad, h2_pad).astype(bf16)
    b2_p = _pad2d(b2, 1, h2_pad).astype(jnp.float32)
    pool_p = _pad2d(pool_mat, g_pad, n_pad).astype(jnp.float32)
    wfc_p = _pad2d(wfc, h2_pad, c_pad).astype(bf16)
    bfc_p = _pad2d(bfc, 1, c_pad).astype(jnp.float32)

    # --- small-graph fully-fused single-launch path ---------------------------
    budget = _vmem_budget_bytes()
    fused_bytes = (2 * n_pad * n_pad * 2            # A_hat (2x buffers)
                   + 2 * n_pad * f_in * 2           # x
                   + 4 * n_pad * h1_pad * 4         # f32 intermediates
                   + 2 * g_pad * n_pad * 4          # pool
                   + 4 * h1_pad * h2_pad * 2        # weights/biases
                   + 2 * h2_pad * c_pad * 2)
    if (not force_tiled) and n_pad <= 2048 and fused_bytes <= budget // 2:
        out = pl.pallas_call(
            fused_small_kernel,
            out_shape=jax.ShapeDtypeStruct((g_pad, c_pad), jnp.float32),
            grid=(1,),
            in_specs=[pl.BlockSpec((n_pad, n_pad), lambda i: (0, 0)),
                      pl.BlockSpec((n_pad, f_in), lambda i: (0, 0)),
                      pl.BlockSpec((f_in, h1_pad), lambda i: (0, 0)),
                      pl.BlockSpec((1, h1_pad), lambda i: (0, 0)),
                      pl.BlockSpec((h1_pad, h2_pad), lambda i: (0, 0)),
                      pl.BlockSpec((1, h2_pad), lambda i: (0, 0)),
                      pl.BlockSpec((g_pad, n_pad), lambda i: (0, 0)),
                      pl.BlockSpec((h2_pad, c_pad), lambda i: (0, 0)),
                      pl.BlockSpec((1, c_pad), lambda i: (0, 0))],
            out_specs=pl.BlockSpec((g_pad, c_pad), lambda i: (0, 0)),
            compiler_params=_cparams(("arbitrary",)),
        )(a_p, x_p, w1_p, b1_p, w2_p, b2_p, pool_p, wfc_p, bfc_p)
        return out[:g, :c]

    # --- tiled large-graph path -----------------------------------------------
    # GCNConv1 + fused (h1 @ W2): xw2 = relu(A_hat @ (x@W1) + b1) @ W2
    xw1 = transform(x_p, w1_p, tm=tm)
    xw2 = propagate(a_p, xw1, b1_p, relu=True, tm=tm, tk=tk,
                    fuse_w2=True, w2=w2_p)
    # dropout(training=False) is identity
    # GCNConv2: h2 = A_hat @ xw2 + b2
    h2 = propagate(a_p, xw2, b2_p, relu=False, tm=tm, tk=tk)
    # global_mean_pool + fc
    out = pool_fc(pool_p, h2, wfc_p, bfc_p, tk=tk)
    return out[:g, :c]


# ----------------------------- JAX glue -------------------------------------

def build_normalized_adjacency(edge_index, num_nodes):
    """Dense D^-1/2 (A + I) D^-1/2 matching GCNConv's default normalization."""
    src, dst = edge_index
    a = jnp.zeros((num_nodes, num_nodes), jnp.float32)
    a = a.at[src, dst].set(1.0)
    a = a + jnp.eye(num_nodes, dtype=jnp.float32)      # add self loops
    deg = a.sum(axis=1)
    d_inv_sqrt = jnp.where(deg > 0, 1.0 / jnp.sqrt(deg), 0.0)
    return d_inv_sqrt[:, None] * a * d_inv_sqrt[None, :]


def build_pool_matrix(batch, num_graphs):
    """(G, N) matrix with 1/count_g at member nodes -> mean pooling via matmul."""
    onehot = (batch[None, :] == jnp.arange(num_graphs)[:, None]).astype(jnp.float32)
    counts = onehot.sum(axis=1, keepdims=True)
    return onehot / jnp.maximum(counts, 1.0)


if __name__ == "__main__":
    F_IN = 16               # num_node_features
    H1, H2 = 128, 64        # GCNConv widths from module __init__
    C = 8                   # num_classes
    G = 2                   # graphs in the batch

    key = jax.random.PRNGKey(0)
    kw1, kb1, kw2, kb2, kwf, kbf, kx1, kx2 = jax.random.split(key, 8)

    # deterministic parameters (shapes implied by the module __init__)
    w1 = jax.random.normal(kw1, (F_IN, H1), jnp.float32) * 0.1
    b1 = jax.random.normal(kb1, (1, H1), jnp.float32) * 0.1
    w2 = jax.random.normal(kw2, (H1, H2), jnp.float32) * 0.1
    b2 = jax.random.normal(kb2, (1, H2), jnp.float32) * 0.1
    wfc = jax.random.normal(kwf, (H2, C), jnp.float32) * 0.1
    bfc = jax.random.normal(kbf, (1, C), jnp.float32) * 0.1

    def make_graph(n, kx):
        # ring inside each of the two graphs (undirected), first/second half split
        x = jax.random.normal(kx, (n, F_IN), jnp.float32)
        half = n // G
        srcs, dsts = [], []
        for g in range(G):
            off = g * half
            for i in range(half):
                u, v = off + i, off + (i + 1) % half
                srcs += [u, v]
                dsts += [v, u]
        edge_index = jnp.array([srcs, dsts], dtype=jnp.int32)
        batch = jnp.repeat(jnp.arange(G, dtype=jnp.int32), half)
        return x, edge_index, batch

    def reference(a_hat, x, pool):
        h = jnp.maximum(a_hat @ (x @ w1) + b1, 0.0)
        h = a_hat @ (h @ w2) + b2
        return (pool @ h) @ wfc + bfc

    def run_case(n, kx, force_tiled):
        x, edge_index, batch = make_graph(n, kx)
        a_hat = build_normalized_adjacency(edge_index, n)
        pool = build_pool_matrix(batch, G)
        out = gcn_forward(a_hat, x, w1, b1, w2, b2, pool, wfc, bfc,
                          force_tiled=force_tiled)
        out = jax.block_until_ready(out)
        ref = reference(a_hat, x, pool)
        assert out.shape == (G, C)
        assert jnp.allclose(out, ref, atol=5e-2, rtol=5e-2), (
            f"max abs err {jnp.max(jnp.abs(out - ref))}")

    # 1) small graph -> fully-fused single-launch path
    run_case(64, kx1, force_tiled=False)
    # 2) exercise the tiled multi-kernel path (resident xw, fused W2, pool+fc)
    run_case(320, kx2, force_tiled=True)

    print("KERNEL_OK")
</pallas_src>

<mosaic_0001>
module attributes {stable_mosaic.version = 11 : i64} {
  func.func @fused_small_kernel(%arg0: i32, %arg1: memref<128x128xbf16, #tpu.memory_space<vmem>>, %arg2: memref<128x16xbf16, #tpu.memory_space<vmem>>, %arg3: memref<16x128xbf16, #tpu.memory_space<vmem>>, %arg4: memref<1x128xf32, #tpu.memory_space<vmem>>, %arg5: memref<128x128xbf16, #tpu.memory_space<vmem>>, %arg6: memref<1x128xf32, #tpu.memory_space<vmem>>, %arg7: memref<8x128xf32, #tpu.memory_space<vmem>>, %arg8: memref<128x128xbf16, #tpu.memory_space<vmem>>, %arg9: memref<1x128xf32, #tpu.memory_space<vmem>>, %arg10: memref<8x128xf32, #tpu.memory_space<vmem>>) attributes {dimension_semantics = [#tpu.dimension_semantics<arbitrary>], iteration_bounds = array<i64: 1>, scalar_prefetch = 0 : i64, scratch_operands = 0 : i64, tpu.core_type = #tpu.core_type<tc>, window_params = [{pipeline_mode = #tpu.pipeline_mode<synchronous>, transform_indices = @transform_0, window_bounds = array<i64: 128, 128>}, {pipeline_mode = #tpu.pipeline_mode<synchronous>, transform_indices = @transform_1, window_bounds = array<i64: 128, 16>}, {pipeline_mode = #tpu.pipeline_mode<synchronous>, transform_indices = @transform_2, window_bounds = array<i64: 16, 128>}, {pipeline_mode = #tpu.pipeline_mode<synchronous>, transform_indices = @transform_3, window_bounds = array<i64: 1, 128>}, {pipeline_mode = #tpu.pipeline_mode<synchronous>, transform_indices = @transform_4, window_bounds = array<i64: 128, 128>}, {pipeline_mode = #tpu.pipeline_mode<synchronous>, transform_indices = @transform_5, window_bounds = array<i64: 1, 128>}, {pipeline_mode = #tpu.pipeline_mode<synchronous>, transform_indices = @transform_6, window_bounds = array<i64: 8, 128>}, {pipeline_mode = #tpu.pipeline_mode<synchronous>, transform_indices = @transform_7, window_bounds = array<i64: 128, 128>}, {pipeline_mode = #tpu.pipeline_mode<synchronous>, transform_indices = @transform_8, window_bounds = array<i64: 1, 128>}, {pipeline_mode = #tpu.pipeline_mode<synchronous>, transform_indices = @transform_9, window_bounds = array<i64: 8, 128>}]} {
    %c0 = arith.constant 0 : index
    %c0_0 = arith.constant 0 : index
    %0 = vector.load %arg2[%c0, %c0_0] : memref<128x16xbf16, #tpu.memory_space<vmem>>, vector<128x16xbf16>
    %c0_1 = arith.constant 0 : index
    %c0_2 = arith.constant 0 : index
    %1 = vector.load %arg3[%c0_1, %c0_2] : memref<16x128xbf16, #tpu.memory_space<vmem>>, vector<16x128xbf16>
    %cst = arith.constant dense<0.000000e+00> : vector<128x128xf32>
    %2 = tpu.matmul %0, %1, %cst {dimension_numbers = #tpu.dot_dimension_numbers<[1], [0], [0], [1], [0, 0, 1, 1], [], []>} : vector<128x16xbf16>, vector<16x128xbf16>, vector<128x128xf32> -> vector<128x128xf32>
    %c0_3 = arith.constant 0 : index
    %c0_4 = arith.constant 0 : index
    %3 = vector.load %arg1[%c0_3, %c0_4] : memref<128x128xbf16, #tpu.memory_space<vmem>>, vector<128x128xbf16>
    %4 = arith.truncf %2 : vector<128x128xf32> to vector<128x128xbf16>
    %cst_5 = arith.constant dense<0.000000e+00> : vector<128x128xf32>
    %5 = tpu.matmul %3, %4, %cst_5 {dimension_numbers = #tpu.dot_dimension_numbers<[1], [0], [0], [1], [0, 0, 1, 1], [], []>} : vector<128x128xbf16>, vector<128x128xbf16>, vector<128x128xf32> -> vector<128x128xf32>
    %c0_6 = arith.constant 0 : index
    %c0_7 = arith.constant 0 : index
    %6 = vector.load %arg4[%c0_6, %c0_7] : memref<1x128xf32, #tpu.memory_space<vmem>>, vector<1x128xf32>
    %7 = vector.broadcast %6 : vector<1x128xf32> to vector<128x128xf32>
    %8 = arith.addf %5, %7 : vector<128x128xf32>
    %cst_8 = arith.constant 0.000000e+00 : f32
    %9 = vector.broadcast %cst_8 : f32 to vector<128x128xf32>
    %10 = arith.maximumf %8, %9 : vector<128x128xf32>
    %11 = arith.truncf %10 : vector<128x128xf32> to vector<128x128xbf16>
    %c0_9 = arith.constant 0 : index
    %c0_10 = arith.constant 0 : index
    %12 = vector.load %arg5[%c0_9, %c0_10] : memref<128x128xbf16, #tpu.memory_space<vmem>>, vector<128x128xbf16>
    %cst_11 = arith.constant dense<0.000000e+00> : vector<128x128xf32>
    %13 = tpu.matmul %11, %12, %cst_11 {dimension_numbers = #tpu.dot_dimension_numbers<[1], [0], [0], [1], [0, 0, 1, 1], [], []>} : vector<128x128xbf16>, vector<128x128xbf16>, vector<128x128xf32> -> vector<128x128xf32>
    %c0_12 = arith.constant 0 : index
    %c0_13 = arith.constant 0 : index
    %14 = vector.load %arg1[%c0_12, %c0_13] : memref<128x128xbf16, #tpu.memory_space<vmem>>, vector<128x128xbf16>
    %15 = arith.truncf %13 : vector<128x128xf32> to vector<128x128xbf16>
    %cst_14 = arith.constant dense<0.000000e+00> : vector<128x128xf32>
    %16 = tpu.matmul %14, %15, %cst_14 {dimension_numbers = #tpu.dot_dimension_numbers<[1], [0], [0], [1], [0, 0, 1, 1], [], []>} : vector<128x128xbf16>, vector<128x128xbf16>, vector<128x128xf32> -> vector<128x128xf32>
    %c0_15 = arith.constant 0 : index
    %c0_16 = arith.constant 0 : index
    %17 = vector.load %arg6[%c0_15, %c0_16] : memref<1x128xf32, #tpu.memory_space<vmem>>, vector<1x128xf32>
    %18 = vector.broadcast %17 : vector<1x128xf32> to vector<128x128xf32>
    %19 = arith.addf %16, %18 : vector<128x128xf32>
    %c0_17 = arith.constant 0 : index
    %c0_18 = arith.constant 0 : index
    %20 = vector.load %arg7[%c0_17, %c0_18] : memref<8x128xf32, #tpu.memory_space<vmem>>, vector<8x128xf32>
    %cst_19 = arith.constant dense<0.000000e+00> : vector<8x128xf32>
    %21 = tpu.matmul %20, %19, %cst_19 {dimension_numbers = #tpu.dot_dimension_numbers<[1], [0], [0], [1], [0, 0, 1, 1], [], []>} : vector<8x128xf32>, vector<128x128xf32>, vector<8x128xf32> -> vector<8x128xf32>
    %c0_20 = arith.constant 0 : index
    %c0_21 = arith.constant 0 : index
    %22 = vector.load %arg8[%c0_20, %c0_21] : memref<128x128xbf16, #tpu.memory_space<vmem>>, vector<128x128xbf16>
    %23 = arith.extf %22 : vector<128x128xbf16> to vector<128x128xf32>
    %cst_22 = arith.constant dense<0.000000e+00> : vector<8x128xf32>
    %24 = tpu.matmul %21, %23, %cst_22 {dimension_numbers = #tpu.dot_dimension_numbers<[1], [0], [0], [1], [0, 0, 1, 1], [], []>} : vector<8x128xf32>, vector<128x128xf32>, vector<8x128xf32> -> vector<8x128xf32>
    %c0_23 = arith.constant 0 : index
    %c0_24 = arith.constant 0 : index
    %25 = vector.load %arg9[%c0_23, %c0_24] : memref<1x128xf32, #tpu.memory_space<vmem>>, vector<1x128xf32>
    %26 = vector.broadcast %25 : vector<1x128xf32> to vector<8x128xf32>
    %27 = arith.addf %24, %26 : vector<8x128xf32>
    %c0_25 = arith.constant 0 : index
    %c0_26 = arith.constant 0 : index
    %28 = vector.load %arg10[%c0_25, %c0_26] : memref<8x128xf32, #tpu.memory_space<vmem>>, vector<8x128xf32>
    tpu.vector_store %arg10[%c0_25, %c0_26], %27 {strides = array<i32>} : memref<8x128xf32, #tpu.memory_space<vmem>>, vector<8x128xf32>,
    return
  }
  func.func @transform_0(%arg0: i32) -> (i32, i32) {
    %c0_i32 = arith.constant 0 : i32
    %c0_i32_0 = arith.constant 0 : i32
    %c0_i32_1 = arith.constant 0 : i32
    return %c0_i32, %c0_i32_0 : i32, i32
  }
  func.func @transform_1(%arg0: i32) -> (i32, i32) {
    %c0_i32 = arith.constant 0 : i32
    %c0_i32_0 = arith.constant 0 : i32
    %c0_i32_1 = arith.constant 0 : i32
    return %c0_i32, %c0_i32_0 : i32, i32
  }
  func.func @transform_2(%arg0: i32) -> (i32, i32) {
    %c0_i32 = arith.constant 0 : i32
    %c0_i32_0 = arith.constant 0 : i32
    %c0_i32_1 = arith.constant 0 : i32
    return %c0_i32, %c0_i32_0 : i32, i32
  }
  func.func @transform_3(%arg0: i32) -> (i32, i32) {
    %c0_i32 = arith.constant 0 : i32
    %c0_i32_0 = arith.constant 0 : i32
    %c0_i32_1 = arith.constant 0 : i32
    return %c0_i32, %c0_i32_0 : i32, i32
  }
  func.func @transform_4(%arg0: i32) -> (i32, i32) {
    %c0_i32 = arith.constant 0 : i32
    %c0_i32_0 = arith.constant 0 : i32
    %c0_i32_1 = arith.constant 0 : i32
    return %c0_i32, %c0_i32_0 : i32, i32
  }
  func.func @transform_5(%arg0: i32) -> (i32, i32) {
    %c0_i32 = arith.constant 0 : i32
    %c0_i32_0 = arith.constant 0 : i32
    %c0_i32_1 = arith.constant 0 : i32
    return %c0_i32, %c0_i32_0 : i32, i32
  }
  func.func @transform_6(%arg0: i32) -> (i32, i32) {
    %c0_i32 = arith.constant 0 : i32
    %c0_i32_0 = arith.constant 0 : i32
    %c0_i32_1 = arith.constant 0 : i32
    return %c0_i32, %c0_i32_0 : i32, i32
  }
  func.func @transform_7(%arg0: i32) -> (i32, i32) {
    %c0_i32 = arith.constant 0 : i32
    %c0_i32_0 = arith.constant 0 : i32
    %c0_i32_1 = arith.constant 0 : i32
    return %c0_i32, %c0_i32_0 : i32, i32
  }
  func.func @transform_8(%arg0: i32) -> (i32, i32) {
    %c0_i32 = arith.constant 0 : i32
    %c0_i32_0 = arith.constant 0 : i32
    %c0_i32_1 = arith.constant 0 : i32
    return %c0_i32, %c0_i32_0 : i32, i32
  }
  func.func @transform_9(%arg0: i32) -> (i32, i32) {
    %c0_i32 = arith.constant 0 : i32
    %c0_i32_0 = arith.constant 0 : i32
    %c0_i32_1 = arith.constant 0 : i32
    return %c0_i32, %c0_i32_0 : i32, i32
  }
}

</mosaic_0001>

<llo_original>
// kernel: tpu_custom_call.1
$region0: #{tpu_custom_call.1}
  #allocation0 [shape = 'u32[]', space=smem, size = 0x4, offset = 0x4, fixed_abs, tag = 'smem constant byte address 0x4 - core index']
  #allocation1 [shape = 'u32[144,128]{1,0:T(1,128)}', space=vmem, size = 0x12000, scoped, tag = 'internal scratch']
  %s0 = inlined_call_operand.vmem [shape: bf16[128,128], index: 0, kind: input, shape index: {}]
  %s1 = inlined_call_operand.vmem [shape: bf16[128,16], index: 1, kind: input, shape index: {}]
  %s2 = inlined_call_operand.vmem [shape: bf16[16,128], index: 2, kind: input, shape index: {}]
  %s3 = inlined_call_operand.vmem [shape: f32[1,128], index: 3, kind: input, shape index: {}]
  %s4 = inlined_call_operand.hbm [shape: bf16[128,128], index: 4, kind: input, shape index: {}]
  %s5 = inlined_call_operand.vmem [shape: f32[1,128], index: 5, kind: input, shape index: {}]
  %s6 = inlined_call_operand.vmem [shape: f32[8,128], index: 6, kind: input, shape index: {}]
  %s7 = inlined_call_operand.hbm [shape: bf16[128,128], index: 7, kind: input, shape index: {}]
  %s8 = inlined_call_operand.vmem [shape: f32[1,128], index: 8, kind: input, shape index: {}]
  %s9 = inlined_call_operand.hbm [shape: f32[8,128], index: 9, kind: output, shape index: {}]
  %s10 = sld [smem:[#allocation0]]
  $region54: #{tpu_custom_call.1} parent=0
    _
  %s12 = ssub.s32 1, %s10
  %s13 = scalar_select 0, %s12, %s10
  $region1: #{tpu_custom_call.1} parent=0
    #allocation2 [shape = 'u8[32768]{0}', space=vmem, size = 0x8000, scoped, tag = 'input window, operand 4, single buffered']
    #allocation3 [shape = 's32[1]{0}', space=sflag, size = 0x4, scoped, tag = 'scoped memory for tpu_custom_call.1']
    #allocation4 [shape = 's32[1]{0}', space=sflag, size = 0x4, scoped, tag = 'scoped memory for tpu_custom_call.1']
    #allocation5 [shape = 'u8[32768]{0}', space=vmem, size = 0x8000, scoped, tag = 'input window, operand 7, single buffered']
    #allocation6 [shape = 's32[1]{0}', space=sflag, size = 0x4, scoped, tag = 'scoped memory for tpu_custom_call.1']
    #allocation7 [shape = 'u8[4096]{0}', space=vmem, size = 0x1000, scoped, tag = 'output window, operand 0, single buffered']
    %14 = vsyncpa [#allocation3], 0
    %15 = vsyncpa [#allocation6], 0
    %16 = vsyncpa [#allocation4], 0
    // Predicated region
    $region2: #{tpu_custom_call.1} parent=1 // pred_check
      _
    $region3: #{tpu_custom_call.1} parent=1 // pred_check_branch
      %18 = sbr.rel (0) target = $region5
    $region4: #{tpu_custom_call.1} parent=1 // pred_region
      _
    $region5: #{tpu_custom_call.1} parent=1 // pred_fallthru
      _
    // Predicated region
    $region6: #{tpu_custom_call.1} parent=1 // pred_check
      _
    $region7: #{tpu_custom_call.1} parent=1 // pred_check_branch
      %20 = sbr.rel (0) target = $region9
    $region8: #{tpu_custom_call.1} parent=1 // pred_region
      _
    $region9: #{tpu_custom_call.1} parent=1 // pred_fallthru
      _
    // Predicated region
    $region10: #{tpu_custom_call.1} parent=1 // pred_check
      _
    $region11: #{tpu_custom_call.1} parent=1 // pred_check_branch
      %22 = sbr.rel (0) target = $region13
    $region12: #{tpu_custom_call.1} parent=1 // pred_region
      _
    $region13: #{tpu_custom_call.1} parent=1 // pred_fallthru
      _
    // Predicated region
    $region14: #{tpu_custom_call.1} parent=1 // pred_check
      _
    $region15: #{tpu_custom_call.1} parent=1 // pred_check_branch
      %24 = sbr.rel (0) target = $region17
    $region16: #{tpu_custom_call.1} parent=1 // pred_region
      _
    $region17: #{tpu_custom_call.1} parent=1 // pred_fallthru
      _
    // Predicated region
    $region18: #{tpu_custom_call.1} parent=1 // pred_check
      _
    $region19: #{tpu_custom_call.1} parent=1 // pred_check_branch
      %26 = sbr.rel (0) target = $region21
    $region20: #{tpu_custom_call.1} parent=1 // pred_region
      %s28 = ssub.s32 1024, 1024
      %29 = vsyncadd [#allocation3], %s28
      %s30 = sshll.u32 [#allocation2], 4
      %s31 = int_to_ptr.vmem [resolvable:$true] %s30
      %36 = dma.hbm_to_vmem [thread:$0]  %s4, 1024, %s31, [#allocation3], 64, 64, 4
    $region21: #{tpu_custom_call.1} parent=1 // pred_fallthru
      _
    // Predicated region
    $region22: #{tpu_custom_call.1} parent=1 // pred_check
      _
    $region23: #{tpu_custom_call.1} parent=1 // pred_check_branch
      %38 = sbr.rel (0) target = $region25
    $region24: #{tpu_custom_call.1} parent=1 // pred_region
      _
    $region25: #{tpu_custom_call.1} parent=1 // pred_fallthru
      _
    // Predicated region
    $region26: #{tpu_custom_call.1} parent=1 // pred_check
      _
    $region27: #{tpu_custom_call.1} parent=1 // pred_check_branch
      %40 = sbr.rel (0) target = $region29
    $region28: #{tpu_custom_call.1} parent=1 // pred_region
      _
    $region29: #{tpu_custom_call.1} parent=1 // pred_fallthru
      _
    // Predicated region
    $region30: #{tpu_custom_call.1} parent=1 // pred_check
      _
    $region31: #{tpu_custom_call.1} parent=1 // pred_check_branch
      %42 = sbr.rel (0) target = $region33
    $region32: #{tpu_custom_call.1} parent=1 // pred_region
      %s44 = ssub.s32 1024, 1024
      %45 = vsyncadd [#allocation6], %s44
      %s46 = sshll.u32 [#allocation5], 4
      %s47 = int_to_ptr.vmem [resolvable:$true] %s46
      %52 = dma.hbm_to_vmem [thread:$0]  %s7, 1024, %s47, [#allocation6], 64, 64, 4
    $region33: #{tpu_custom_call.1} parent=1 // pred_fallthru
      _
    // Predicated region
    $region34: #{tpu_custom_call.1} parent=1 // pred_check
      _
    $region35: #{tpu_custom_call.1} parent=1 // pred_check_branch
      %54 = sbr.rel (0) target = $region37
    $region36: #{tpu_custom_call.1} parent=1 // pred_region
      _
    $region37: #{tpu_custom_call.1} parent=1 // pred_fallthru
      _
    // Predicated region
    $region38: #{tpu_custom_call.1} parent=1 // pred_check
      _
    $region39: #{tpu_custom_call.1} parent=1 // pred_check_branch
      %56 = sbr.rel (0) target = $region41
    $region40: #{tpu_custom_call.1} parent=1 // pred_region
      %57 = dma.done [#allocation3], 1024
    $region41: #{tpu_custom_call.1} parent=1 // pred_fallthru
      _
    // Predicated region
    $region42: #{tpu_custom_call.1} parent=1 // pred_check
      _
    $region43: #{tpu_custom_call.1} parent=1 // pred_check_branch
      %59 = sbr.rel (0) target = $region45
    $region44: #{tpu_custom_call.1} parent=1 // pred_region
      %60 = dma.done [#allocation6], 1024
    $region45: #{tpu_custom_call.1} parent=1 // pred_fallthru
      _
    %v62 = vld [vmem:[%s1] sm:$0xf]
    %v63 = vld [vmem:[%s1 + $0x4] sm:$0xf]
    %v64 = vld [vmem:[%s1 + $0x8] sm:$0xf]
    %v65 = vld [vmem:[%s1 + $0xc] sm:$0xf]
    %v66 = vld [vmem:[%s1 + $0x10] sm:$0xf]
    %v67 = vld [vmem:[%s1 + $0x14] sm:$0xf]
    %v68 = vld [vmem:[%s1 + $0x18] sm:$0xf]
    %v69 = vld [vmem:[%s1 + $0x1c] sm:$0xf]
    %v70 = vld [vmem:[%s1 + $0x20] sm:$0xf]
    %v71 = vld [vmem:[%s1 + $0x24] sm:$0xf]
    %v72 = vld [vmem:[%s1 + $0x28] sm:$0xf]
    %v73 = vld [vmem:[%s1 + $0x2c] sm:$0xf]
    %v74 = vld [vmem:[%s1 + $0x30] sm:$0xf]
    %v75 = vld [vmem:[%s1 + $0x34] sm:$0xf]
    %v76 = vld [vmem:[%s1 + $0x38] sm:$0xf]
    %v77 = vld [vmem:[%s1 + $0x3c] sm:$0xf]
    %v78 = vld [vmem:[%s2] sm:$0xf]
    %v79 = vld [vmem:[%s2 + $0x4] sm:$0xf]
    %v96 = vunpack.c.l.b16 %v62
    %v97 = vunpack.c.l.b16 %v63
    %v98 = vunpack.c.l.b16 %v64
    %v99 = vunpack.c.l.b16 %v65
    %v100 = vunpack.c.l.b16 %v66
    %v101 = vunpack.c.l.b16 %v67
    %v102 = vunpack.c.l.b16 %v68
    %v103 = vunpack.c.l.b16 %v69
    %v104 = vunpack.c.l.b16 %v70
    %v105 = vunpack.c.l.b16 %v71
    %v106 = vunpack.c.l.b16 %v72
    %v107 = vunpack.c.l.b16 %v73
    %v108 = vunpack.c.l.b16 %v74
    %v109 = vunpack.c.l.b16 %v75
    %v110 = vunpack.c.l.b16 %v76
    %v111 = vunpack.c.l.b16 %v77
    %v112 = vpack.c.b16 %v97, %v96
    %v113 = vpack.c.b16 %v99, %v98
    %v114 = vpack.c.b16 %v101, %v100
    %v115 = vpack.c.b16 %v103, %v102
    %v116 = vpack.c.b16 %v105, %v104
    %v117 = vpack.c.b16 %v107, %v106
    %v118 = vpack.c.b16 %v109, %v108
    %v119 = vpack.c.b16 %v111, %v110
    %v122 = vunpack.c.l.b16 %v78
    %v123 = vunpack.c.l.b16 %v79
    %v124 = vpack.c.b16 %v123, %v122
    %vm126 = vcmask 130048
    %v128 = vsel %vm126, %v112, 0
    %v131 = vsel %vm126, %v113, 0
    %v134 = vsel %vm126, %v114, 0
    %v137 = vsel %vm126, %v115, 0
    %v140 = vsel %vm126, %v116, 0
    %v143 = vsel %vm126, %v117, 0
    %v146 = vsel %vm126, %v118, 0
    %v149 = vsel %vm126, %v119, 0
    %151 = vmatprep.subr.bf16.mxu0 0
    %152 = vmatpush1.bf16.msra.mxu0 %v124
    %153 = vmatprep.subr.bf16.mxu0 0
    %154 = vmatpush1.bf16.msra.mxu0 0
    %155 = vmatprep.subr.bf16.mxu0 0
    %156 = vmatpush1.bf16.msra.mxu0 0
    %157 = vmatprep.subr.bf16.mxu0 0
    %158 = vmatpush1.bf16.msra.mxu0 0
    %159 = vmatprep.subr.bf16.mxu0 0
    %160 = vmatpush1.bf16.msra.mxu0 0
    %161 = vmatprep.subr.bf16.mxu0 0
    %162 = vmatpush1.bf16.msra.mxu0 0
    %163 = vmatprep.subr.bf16.mxu0 0
    %164 = vmatpush1.bf16.msra.mxu0 0
    %165 = vmatprep.subr.bf16.mxu0 0
    %166 = vmatpush1.bf16.msra.mxu0 0
    %167 = vmatprep.subr.bf16.mxu0 0
    %168 = vmatpush1.bf16.msra.mxu0 0
    %169 = vmatprep.subr.bf16.mxu0 0
    %170 = vmatpush1.bf16.msra.mxu0 0
    %171 = vmatprep.subr.bf16.mxu0 0
    %172 = vmatpush1.bf16.msra.mxu0 0
    %173 = vmatprep.subr.bf16.mxu0 0
    %174 = vmatpush1.bf16.msra.mxu0 0
    %175 = vmatprep.subr.bf16.mxu0 0
    %176 = vmatpush1.bf16.msra.mxu0 0
    %177 = vmatprep.subr.bf16.mxu0 0
    %178 = vmatpush1.bf16.msra.mxu0 0
    %179 = vmatprep.subr.bf16.mxu0 0
    %180 = vmatpush1.bf16.msra.mxu0 0
    %181 = vmatprep.subr.bf16.mxu0 0
    %182 = vmatpush1.bf16.msra.mxu0 0
    %183 = vmatprep.mubr.bf16.mxu0 0
    %184 = vmatmul.mubr.bf16.gmra.mrb[0].mxu0 %v128
    %v185 = vpop.f32.mrb[0].mxu0
    %v186 = vadd.f32 0.0, %v185
    %v187 = vpop.f32.mrb[0].mxu0
    %v188 = vpop.f32.mrb[0].mxu0
    %v189 = vadd.f32 0.0, %v188
    %v190 = vpop.f32.mrb[0].mxu0
    %191 = vmatprep.mubr.bf16.mxu0 0
    %192 = vmatmul.mubr.bf16.gmra.mrb[0].mxu0 %v131
    %v193 = vpop.f32.mrb[0].mxu0
    %v194 = vadd.f32 0.0, %v193
    %v195 = vpop.f32.mrb[0].mxu0
    %v196 = vpop.f32.mrb[0].mxu0
    %v197 = vadd.f32 0.0, %v196
    %v198 = vpop.f32.mrb[0].mxu0
    %199 = vmatprep.mubr.bf16.mxu0 0
    %200 = vmatmul.mubr.bf16.gmra.mrb[0].mxu0 %v134
    %v201 = vpop.f32.mrb[0].mxu0
    %v202 = vadd.f32 0.0, %v201
    %v203 = vpop.f32.mrb[0].mxu0
    %v204 = vpop.f32.mrb[0].mxu0
    %v205 = vadd.f32 0.0, %v204
    %v206 = vpop.f32.mrb[0].mxu0
    %207 = vmatprep.mubr.bf16.mxu0 0
    %208 = vmatmul.mubr.bf16.gmra.mrb[0].mxu0 %v137
    %v209 = vpop.f32.mrb[0].mxu0
    %v210 = vadd.f32 0.0, %v209
    %v211 = vpop.f32.mrb[0].mxu0
    %v212 = vpop.f32.mrb[0].mxu0
    %v213 = vadd.f32 0.0, %v212
    %v214 = vpop.f32.mrb[0].mxu0
    %215 = vmatprep.mubr.bf16.mxu0 0
    %216 = vmatmul.mubr.bf16.gmra.mrb[0].mxu0 %v140
    %v217 = vpop.f32.mrb[0].mxu0
    %v218 = vadd.f32 0.0, %v217
    %v219 = vpop.f32.mrb[0].mxu0
    %v220 = vpop.f32.mrb[0].mxu0
    %v221 = vadd.f32 0.0, %v220
    %v222 = vpop.f32.mrb[0].mxu0
    %223 = vmatprep.mubr.bf16.mxu0 0
    %224 = vmatmul.mubr.bf16.gmra.mrb[0].mxu0 %v143
    %v225 = vpop.f32.mrb[0].mxu0
    %v226 = vadd.f32 0.0, %v225
    %v227 = vpop.f32.mrb[0].mxu0
    %v228 = vpop.f32.mrb[0].mxu0
    %v229 = vadd.f32 0.0, %v228
    %v230 = vpop.f32.mrb[0].mxu0
    %231 = vmatprep.mubr.bf16.mxu0 0
    %232 = vmatmul.mubr.bf16.gmra.mrb[0].mxu0 %v146
    %v233 = vpop.f32.mrb[0].mxu0
    %v234 = vadd.f32 0.0, %v233
    %v235 = vpop.f32.mrb[0].mxu0
    %v236 = vpop.f32.mrb[0].mxu0
    %v237 = vadd.f32 0.0, %v236
    %v238 = vpop.f32.mrb[0].mxu0
    %239 = vmatprep.mubr.bf16.mxu0 0
    %240 = vmatmul.mubr.bf16.gmra.mrb[0].mxu0 %v149
    %v241 = vpop.f32.mrb[0].mxu0
    %v242 = vadd.f32 0.0, %v241
    %v243 = vpop.f32.mrb[0].mxu0
    %v244 = vpop.f32.mrb[0].mxu0
    %v245 = vadd.f32 0.0, %v244
    %v246 = vpop.f32.mrb[0].mxu0
    %247 = vdwg.mxu0
    %v248 = vld [vmem:[%s0] sm:$0xf]
    %v249 = vld [vmem:[%s0 + $0x4] sm:$0xf]
    %v250 = vld [vmem:[%s0 + $0x8] sm:$0xf]
    %v251 = vld [vmem:[%s0 + $0xc] sm:$0xf]
    %v252 = vld [vmem:[%s0 + $0x10] sm:$0xf]
    %v253 = vld [vmem:[%s0 + $0x14] sm:$0xf]
    %v254 = vld [vmem:[%s0 + $0x18] sm:$0xf]
    %v255 = vld [vmem:[%s0 + $0x1c] sm:$0xf]
    %v256 = vld [vmem:[%s0 + $0x20] sm:$0xf]
    %v257 = vld [vmem:[%s0 + $0x24] sm:$0xf]
    %v258 = vld [vmem:[%s0 + $0x28] sm:$0xf]
    %v259 = vld [vmem:[%s0 + $0x2c] sm:$0xf]
    %v260 = vld [vmem:[%s0 + $0x30] sm:$0xf]
    %v261 = vld [vmem:[%s0 + $0x34] sm:$0xf]
    %v262 = vld [vmem:[%s0 + $0x38] sm:$0xf]
    %v263 = vld [vmem:[%s0 + $0x3c] sm:$0xf]
    %v264 = vpack.c.bf16 %v189, %v186
    %v265 = vpack.c.bf16 %v197, %v194
    %v266 = vpack.c.bf16 %v205, %v202
    %v267 = vpack.c.bf16 %v213, %v210
    %v268 = vpack.c.bf16 %v221, %v218
    %v269 = vpack.c.bf16 %v229, %v226
    %v270 = vpack.c.bf16 %v237, %v234
    %v271 = vpack.c.bf16 %v245, %v242
    %v272 = vld [vmem:[%s3] sm:$0x1]
    %v274 = vlaneseq
    %v275 = vshrl.u32 %v274, 7
    %v276 = vsub.s32 0, %v275
    %v277 = vrot.slane %v272, %v276
    %v295 = vunpack.c.l.b16 %v248
    %v296 = vunpack.c.l.b16 %v249
    %v297 = vunpack.c.l.b16 %v250
    %v298 = vunpack.c.l.b16 %v251
    %v299 = vunpack.c.l.b16 %v252
    %v300 = vunpack.c.l.b16 %v253
    %v301 = vunpack.c.l.b16 %v254
    %v302 = vunpack.c.l.b16 %v255
    %v303 = vunpack.c.l.b16 %v256
    %v304 = vunpack.c.l.b16 %v257
    %v305 = vunpack.c.l.b16 %v258
    %v306 = vunpack.c.l.b16 %v259
    %v307 = vunpack.c.l.b16 %v260
    %v308 = vunpack.c.l.b16 %v261
    %v309 = vunpack.c.l.b16 %v262
    %v310 = vunpack.c.l.b16 %v263
    %v311 = vpack.c.b16 %v296, %v295
    %v312 = vpack.c.b16 %v298, %v297
    %v313 = vpack.c.b16 %v300, %v299
    %v314 = vpack.c.b16 %v302, %v301
    %v315 = vpack.c.b16 %v304, %v303
    %v316 = vpack.c.b16 %v306, %v305
    %v317 = vpack.c.b16 %v308, %v307
    %v318 = vpack.c.b16 %v310, %v309
    %327 = vmatprep.subr.bf16.mxu0 0
    %328 = vmatpush1.bf16.msra.mxu0 %v264
    %329 = vmatprep.subr.bf16.mxu0 0
    %330 = vmatpush1.bf16.msra.mxu0 %v265
    %331 = vmatprep.subr.bf16.mxu0 0
    %332 = vmatpush1.bf16.msra.mxu0 %v266
    %333 = vmatprep.subr.bf16.mxu0 0
    %334 = vmatpush1.bf16.msra.mxu0 %v267
    %335 = vmatprep.subr.bf16.mxu0 0
    %336 = vmatpush1.bf16.msra.mxu0 %v268
    %337 = vmatprep.subr.bf16.mxu0 0
    %338 = vmatpush1.bf16.msra.mxu0 %v269
    %339 = vmatprep.subr.bf16.mxu0 0
    %340 = vmatpush1.bf16.msra.mxu0 %v270
    %341 = vmatprep.subr.bf16.mxu0 0
    %342 = vmatpush1.bf16.msra.mxu0 %v271
    %343 = vmatprep.subr.bf16.mxu0 0
    %344 = vmatpush1.bf16.msra.mxu0 0
    %345 = vmatprep.subr.bf16.mxu0 0
    %346 = vmatpush1.bf16.msra.mxu0 0
    %347 = vmatprep.subr.bf16.mxu0 0
    %348 = vmatpush1.bf16.msra.mxu0 0
    %349 = vmatprep.subr.bf16.mxu0 0
    %350 = vmatpush1.bf16.msra.mxu0 0
    %351 = vmatprep.subr.bf16.mxu0 0
    %352 = vmatpush1.bf16.msra.mxu0 0
    %353 = vmatprep.subr.bf16.mxu0 0
    %354 = vmatpush1.bf16.msra.mxu0 0
    %355 = vmatprep.subr.bf16.mxu0 0
    %356 = vmatpush1.bf16.msra.mxu0 0
    %357 = vmatprep.subr.bf16.mxu0 0
    %358 = vmatpush1.bf16.msra.mxu0 0
    %359 = vmatprep.mubr.bf16.mxu0 0
    %360 = vmatmul.mubr.bf16.gmra.mrb[0].mxu0 %v311
    %v361 = vpop.f32.mrb[0].mxu0
    %v362 = vadd.f32 %v277, %v361
    %v363 = vpop.f32.mrb[0].mxu0
    %v364 = vpop.f32.mrb[0].mxu0
    %v365 = vadd.f32 %v277, %v364
    %v366 = vpop.f32.mrb[0].mxu0
    %367 = vmatprep.mubr.bf16.mxu0 0
    %368 = vmatmul.mubr.bf16.gmra.mrb[0].mxu0 %v312
    %v369 = vpop.f32.mrb[0].mxu0
    %v370 = vadd.f32 %v277, %v369
    %v371 = vpop.f32.mrb[0].mxu0
    %v372 = vpop.f32.mrb[0].mxu0
    %v373 = vadd.f32 %v277, %v372
    %v374 = vpop.f32.mrb[0].mxu0
    %375 = vmatprep.mubr.bf16.mxu0 0
    %376 = vmatmul.mubr.bf16.gmra.mrb[0].mxu0 %v313
    %v377 = vpop.f32.mrb[0].mxu0
    %v378 = vadd.f32 %v277, %v377
    %v379 = vpop.f32.mrb[0].mxu0
    %v380 = vpop.f32.mrb[0].mxu0
    %v381 = vadd.f32 %v277, %v380
    %v382 = vpop.f32.mrb[0].mxu0
    %383 = vmatprep.mubr.bf16.mxu0 0
    %384 = vmatmul.mubr.bf16.gmra.mrb[0].mxu0 %v314
    %v385 = vpop.f32.mrb[0].mxu0
    %v386 = vadd.f32 %v277, %v385
    %v387 = vpop.f32.mrb[0].mxu0
    %v388 = vpop.f32.mrb[0].mxu0
    %v389 = vadd.f32 %v277, %v388
    %v390 = vpop.f32.mrb[0].mxu0
    %391 = vmatprep.mubr.bf16.mxu0 0
    %392 = vmatmul.mubr.bf16.gmra.mrb[0].mxu0 %v315
    %v393 = vpop.f32.mrb[0].mxu0
    %v394 = vadd.f32 %v277, %v393
    %v395 = vpop.f32.mrb[0].mxu0
    %v396 = vpop.f32.mrb[0].mxu0
    %v397 = vadd.f32 %v277, %v396
    %v398 = vpop.f32.mrb[0].mxu0
    %399 = vmatprep.mubr.bf16.mxu0 0
    %400 = vmatmul.mubr.bf16.gmra.mrb[0].mxu0 %v316
    %v401 = vpop.f32.mrb[0].mxu0
    %v402 = vadd.f32 %v277, %v401
    %v403 = vpop.f32.mrb[0].mxu0
    %v404 = vpop.f32.mrb[0].mxu0
    %v405 = vadd.f32 %v277, %v404
    %v406 = vpop.f32.mrb[0].mxu0
    %407 = vmatprep.mubr.bf16.mxu0 0
    %408 = vmatmul.mubr.bf16.gmra.mrb[0].mxu0 %v317
    %v409 = vpop.f32.mrb[0].mxu0
    %v410 = vadd.f32 %v277, %v409
    %v411 = vpop.f32.mrb[0].mxu0
    %v412 = vpop.f32.mrb[0].mxu0
    %v413 = vadd.f32 %v277, %v412
    %v414 = vpop.f32.mrb[0].mxu0
    %415 = vmatprep.mubr.bf16.mxu0 0
    %416 = vmatmul.mubr.bf16.gmra.mrb[0].mxu0 %v318
    %v417 = vpop.f32.mrb[0].mxu0
    %v418 = vadd.f32 %v277, %v417
    %v419 = vpop.f32.mrb[0].mxu0
    %v420 = vpop.f32.mrb[0].mxu0
    %v421 = vadd.f32 %v277, %v420
    %v422 = vpop.f32.mrb[0].mxu0
    %423 = vdwg.mxu0
    %v424 = vmax.f32 %v362, 0.0
    %v425 = vmax.f32 %v365, 0.0
    %v426 = vmax.f32 %v370, 0.0
    %v427 = vmax.f32 %v373, 0.0
    %v428 = vmax.f32 %v378, 0.0
    %v429 = vmax.f32 %v381, 0.0
    %v430 = vmax.f32 %v386, 0.0
    %v431 = vmax.f32 %v389, 0.0
    %v432 = vmax.f32 %v394, 0.0
    %v433 = vmax.f32 %v397, 0.0
    %v434 = vmax.f32 %v402, 0.0
    %v435 = vmax.f32 %v405, 0.0
    %v436 = vmax.f32 %v410, 0.0
    %v437 = vmax.f32 %v413, 0.0
    %v438 = vmax.f32 %v418, 0.0
    %v439 = vmax.f32 %v421, 0.0
    %v440 = vpack.c.bf16 %v425, %v424
    %v441 = vpack.c.bf16 %v427, %v426
    %v442 = vpack.c.bf16 %v429, %v428
    %v443 = vpack.c.bf16 %v431, %v430
    %v444 = vpack.c.bf16 %v433, %v432
    %v445 = vpack.c.bf16 %v435, %v434
    %v446 = vpack.c.bf16 %v437, %v436
    %v447 = vpack.c.bf16 %v439, %v438
    %v448 = vld [vmem:[#allocation2] sm:$0xf]
    %v449 = vld [vmem:[#allocation2 + $0x4] sm:$0xf]
    %v450 = vld [vmem:[#allocation2 + $0x8] sm:$0xf]
    %v451 = vld [vmem:[#allocation2 + $0xc] sm:$0xf]
    %v452 = vld [vmem:[#allocation2 + $0x10] sm:$0xf]
    %v453 = vld [vmem:[#allocation2 + $0x14] sm:$0xf]
    %v454 = vld [vmem:[#allocation2 + $0x18] sm:$0xf]
    %v455 = vld [vmem:[#allocation2 + $0x1c] sm:$0xf]
    %v456 = vld [vmem:[#allocation2 + $0x20] sm:$0xf]
    %v457 = vld [vmem:[#allocation2 + $0x24] sm:$0xf]
    %v458 = vld [vmem:[#allocation2 + $0x28] sm:$0xf]
    %v459 = vld [vmem:[#allocation2 + $0x2c] sm:$0xf]
    %v460 = vld [vmem:[#allocation2 + $0x30] sm:$0xf]
    %v461 = vld [vmem:[#allocation2 + $0x34] sm:$0xf]
    %v462 = vld [vmem:[#allocation2 + $0x38] sm:$0xf]
    %v463 = vld [vmem:[#allocation2 + $0x3c] sm:$0xf]
    %v480 = vunpack.c.l.b16 %v448
    %v481 = vunpack.c.l.b16 %v449
    %v482 = vunpack.c.l.b16 %v450
    %v483 = vunpack.c.l.b16 %v451
    %v484 = vunpack.c.l.b16 %v452
    %v485 = vunpack.c.l.b16 %v453
    %v486 = vunpack.c.l.b16 %v454
    %v487 = vunpack.c.l.b16 %v455
    %v488 = vunpack.c.l.b16 %v456
    %v489 = vunpack.c.l.b16 %v457
    %v490 = vunpack.c.l.b16 %v458
    %v491 = vunpack.c.l.b16 %v459
    %v492 = vunpack.c.l.b16 %v460
    %v493 = vunpack.c.l.b16 %v461
    %v494 = vunpack.c.l.b16 %v462
    %v495 = vunpack.c.l.b16 %v463
    %v496 = vpack.c.b16 %v481, %v480
    %v497 = vpack.c.b16 %v483, %v482
    %v498 = vpack.c.b16 %v485, %v484
    %v499 = vpack.c.b16 %v487, %v486
    %v500 = vpack.c.b16 %v489, %v488
    %v501 = vpack.c.b16 %v491, %v490
    %v502 = vpack.c.b16 %v493, %v492
    %v503 = vpack.c.b16 %v495, %v494
    %512 = vmatprep.subr.bf16.mxu0 0
    %513 = vmatpush1.bf16.msra.mxu0 %v496
    %514 = vmatprep.subr.bf16.mxu0 0
    %515 = vmatpush1.bf16.msra.mxu0 %v497
    %516 = vmatprep.subr.bf16.mxu0 0
    %517 = vmatpush1.bf16.msra.mxu0 %v498
    %518 = vmatprep.subr.bf16.mxu0 0
    %519 = vmatpush1.bf16.msra.mxu0 %v499
    %520 = vmatprep.subr.bf16.mxu0 0
    %521 = vmatpush1.bf16.msra.mxu0 %v500
    %522 = vmatprep.subr.bf16.mxu0 0
    %523 = vmatpush1.bf16.msra.mxu0 %v501
    %524 = vmatprep.subr.bf16.mxu0 0
    %525 = vmatpush1.bf16.msra.mxu0 %v502
    %526 = vmatprep.subr.bf16.mxu0 0
    %527 = vmatpush1.bf16.msra.mxu0 %v503
    %528 = vmatprep.subr.bf16.mxu0 0
    %529 = vmatpush1.bf16.msra.mxu0 0
    %530 = vmatprep.subr.bf16.mxu0 0
    %531 = vmatpush1.bf16.msra.mxu0 0
    %532 = vmatprep.subr.bf16.mxu0 0
    %533 = vmatpush1.bf16.msra.mxu0 0
    %534 = vmatprep.subr.bf16.mxu0 0
    %535 = vmatpush1.bf16.msra.mxu0 0
    %536 = vmatprep.subr.bf16.mxu0 0
    %537 = vmatpush1.bf16.msra.mxu0 0
    %538 = vmatprep.subr.bf16.mxu0 0
    %539 = vmatpush1.bf16.msra.mxu0 0
    %540 = vmatprep.subr.bf16.mxu0 0
    %541 = vmatpush1.bf16.msra.mxu0 0
    %542 = vmatprep.subr.bf16.mxu0 0
    %543 = vmatpush1.bf16.msra.mxu0 0
    %544 = vmatprep.mubr.bf16.mxu0 0
    %545 = vmatmul.mubr.bf16.gmra.mrb[0].mxu0 %v440
    %v546 = vpop.f32.mrb[0].mxu0
    %v547 = vadd.f32 0.0, %v546
    %v548 = vpop.f32.mrb[0].mxu0
    %v549 = vpop.f32.mrb[0].mxu0
    %v550 = vadd.f32 0.0, %v549
    %v551 = vpop.f32.mrb[0].mxu0
    %552 = vmatprep.mubr.bf16.mxu0 0
    %553 = vmatmul.mubr.bf16.gmra.mrb[0].mxu0 %v441
    %v554 = vpop.f32.mrb[0].mxu0
    %v555 = vadd.f32 0.0, %v554
    %v556 = vpop.f32.mrb[0].mxu0
    %v557 = vpop.f32.mrb[0].mxu0
    %v558 = vadd.f32 0.0, %v557
    %v559 = vpop.f32.mrb[0].mxu0
    %560 = vmatprep.mubr.bf16.mxu0 0
    %561 = vmatmul.mubr.bf16.gmra.mrb[0].mxu0 %v442
    %v562 = vpop.f32.mrb[0].mxu0
    %v563 = vadd.f32 0.0, %v562
    %v564 = vpop.f32.mrb[0].mxu0
    %v565 = vpop.f32.mrb[0].mxu0
    %v566 = vadd.f32 0.0, %v565
    %v567 = vpop.f32.mrb[0].mxu0
    %568 = vmatprep.mubr.bf16.mxu0 0
    %569 = vmatmul.mubr.bf16.gmra.mrb[0].mxu0 %v443
    %v570 = vpop.f32.mrb[0].mxu0
    %v571 = vadd.f32 0.0, %v570
    %v572 = vpop.f32.mrb[0].mxu0
    %v573 = vpop.f32.mrb[0].mxu0
    %v574 = vadd.f32 0.0, %v573
    %v575 = vpop.f32.mrb[0].mxu0
    %576 = vmatprep.mubr.bf16.mxu0 0
    %577 = vmatmul.mubr.bf16.gmra.mrb[0].mxu0 %v444
    %v578 = vpop.f32.mrb[0].mxu0
    %v579 = vadd.f32 0.0, %v578
    %v580 = vpop.f32.mrb[0].mxu0
    %v581 = vpop.f32.mrb[0].mxu0
    %v582 = vadd.f32 0.0, %v581
    %v583 = vpop.f32.mrb[0].mxu0
    %584 = vmatprep.mubr.bf16.mxu0 0
    %585 = vmatmul.mubr.bf16.gmra.mrb[0].mxu0 %v445
    %v586 = vpop.f32.mrb[0].mxu0
    %v587 = vadd.f32 0.0, %v586
    %v588 = vpop.f32.mrb[0].mxu0
    %v589 = vpop.f32.mrb[0].mxu0
    %v590 = vadd.f32 0.0, %v589
    %v591 = vpop.f32.mrb[0].mxu0
    %592 = vmatprep.mubr.bf16.mxu0 0
    %593 = vmatmul.mubr.bf16.gmra.mrb[0].mxu0 %v446
    %v594 = vpop.f32.mrb[0].mxu0
    %v595 = vadd.f32 0.0, %v594
    %v596 = vpop.f32.mrb[0].mxu0
    %v597 = vpop.f32.mrb[0].mxu0
    %v598 = vadd.f32 0.0, %v597
    %v599 = vpop.f32.mrb[0].mxu0
    %600 = vmatprep.mubr.bf16.mxu0 0
    %601 = vmatmul.mubr.bf16.gmra.mrb[0].mxu0 %v447
    %v602 = vpop.f32.mrb[0].mxu0
    %v603 = vadd.f32 0.0, %v602
    %v604 = vpop.f32.mrb[0].mxu0
    %v605 = vpop.f32.mrb[0].mxu0
    %v606 = vadd.f32 0.0, %v605
    %v607 = vpop.f32.mrb[0].mxu0
    %608 = vdwg.mxu0
    %v609 = vpack.c.bf16 %v550, %v547
    %v610 = vpack.c.bf16 %v558, %v555
    %v611 = vpack.c.bf16 %v566, %v563
    %v612 = vpack.c.bf16 %v574, %v571
    %v613 = vpack.c.bf16 %v582, %v579
    %v614 = vpack.c.bf16 %v590, %v587
    %v615 = vpack.c.bf16 %v598, %v595
    %v616 = vpack.c.bf16 %v606, %v603
    %v617 = vld [vmem:[%s5] sm:$0x1]
    %v619 = vlaneseq
    %v620 = vshrl.u32 %v619, 7
    %v621 = vsub.s32 0, %v620
    %v622 = vrot.slane %v617, %v621
    %624 = vmatprep.subr.bf16.mxu0 0
    %625 = vmatpush1.bf16.msra.mxu0 %v609
    %626 = vmatprep.subr.bf16.mxu0 0
    %627 = vmatpush1.bf16.msra.mxu0 %v610
    %628 = vmatprep.subr.bf16.mxu0 0
    %629 = vmatpush1.bf16.msra.mxu0 %v611
    %630 = vmatprep.subr.bf16.mxu0 0
    %631 = vmatpush1.bf16.msra.mxu0 %v612
    %632 = vmatprep.subr.bf16.mxu0 0
    %633 = vmatpush1.bf16.msra.mxu0 %v613
    %634 = vmatprep.subr.bf16.mxu0 0
    %635 = vmatpush1.bf16.msra.mxu0 %v614
    %636 = vmatprep.subr.bf16.mxu0 0
    %637 = vmatpush1.bf16.msra.mxu0 %v615
    %638 = vmatprep.subr.bf16.mxu0 0
    %639 = vmatpush1.bf16.msra.mxu0 %v616
    %640 = vmatprep.subr.bf16.mxu0 0
    %641 = vmatpush1.bf16.msra.mxu0 0
    %642 = vmatprep.subr.bf16.mxu0 0
    %643 = vmatpush1.bf16.msra.mxu0 0
    %644 = vmatprep.subr.bf16.mxu0 0
    %645 = vmatpush1.bf16.msra.mxu0 0
    %646 = vmatprep.subr.bf16.mxu0 0
    %647 = vmatpush1.bf16.msra.mxu0 0
    %648 = vmatprep.subr.bf16.mxu0 0
    %649 = vmatpush1.bf16.msra.mxu0 0
    %650 = vmatprep.subr.bf16.mxu0 0
    %651 = vmatpush1.bf16.msra.mxu0 0
    %652 = vmatprep.subr.bf16.mxu0 0
    %653 = vmatpush1.bf16.msra.mxu0 0
    %654 = vmatprep.subr.bf16.mxu0 0
    %655 = vmatpush1.bf16.msra.mxu0 0
    %656 = vmatprep.mubr.bf16.mxu0 0
    %657 = vmatmul.mubr.bf16.gmra.mrb[0].mxu0 %v311
    %v658 = vpop.f32.mrb[0].mxu0
    %v659 = vadd.f32 %v622, %v658
    %v660 = vpop.f32.mrb[0].mxu0
    %v661 = vpop.f32.mrb[0].mxu0
    %v662 = vadd.f32 %v622, %v661
    %v663 = vpop.f32.mrb[0].mxu0
    %664 = vmatprep.mubr.bf16.mxu0 0
    %665 = vmatmul.mubr.bf16.gmra.mrb[0].mxu0 %v312
    %v666 = vpop.f32.mrb[0].mxu0
    %v667 = vadd.f32 %v622, %v666
    %v668 = vpop.f32.mrb[0].mxu0
    %v669 = vpop.f32.mrb[0].mxu0
    %v670 = vadd.f32 %v622, %v669
    %v671 = vpop.f32.mrb[0].mxu0
    %672 = vmatprep.mubr.bf16.mxu0 0
    %673 = vmatmul.mubr.bf16.gmra.mrb[0].mxu0 %v313
    %v674 = vpop.f32.mrb[0].mxu0
    %v675 = vadd.f32 %v622, %v674
    %v676 = vpop.f32.mrb[0].mxu0
    %v677 = vpop.f32.mrb[0].mxu0
    %v678 = vadd.f32 %v622, %v677
    %v679 = vpop.f32.mrb[0].mxu0
    %680 = vmatprep.mubr.bf16.mxu0 0
    %681 = vmatmul.mubr.bf16.gmra.mrb[0].mxu0 %v314
    %v682 = vpop.f32.mrb[0].mxu0
    %v683 = vadd.f32 %v622, %v682
    %v684 = vpop.f32.mrb[0].mxu0
    %v685 = vpop.f32.mrb[0].mxu0
    %v686 = vadd.f32 %v622, %v685
    %v687 = vpop.f32.mrb[0].mxu0
    %688 = vmatprep.mubr.bf16.mxu0 0
    %689 = vmatmul.mubr.bf16.gmra.mrb[0].mxu0 %v315
    %v690 = vpop.f32.mrb[0].mxu0
    %v691 = vadd.f32 %v622, %v690
    %v692 = vpop.f32.mrb[0].mxu0
    %v693 = vpop.f32.mrb[0].mxu0
    %v694 = vadd.f32 %v622, %v693
    %v695 = vpop.f32.mrb[0].mxu0
    %696 = vmatprep.mubr.bf16.mxu0 0
    %697 = vmatmul.mubr.bf16.gmra.mrb[0].mxu0 %v316
    %v698 = vpop.f32.mrb[0].mxu0
    %v699 = vadd.f32 %v622, %v698
    %v700 = vpop.f32.mrb[0].mxu0
    %v701 = vpop.f32.mrb[0].mxu0
    %v702 = vadd.f32 %v622, %v701
    %v703 = vpop.f32.mrb[0].mxu0
    %704 = vmatprep.mubr.bf16.mxu0 0
    %705 = vmatmul.mubr.bf16.gmra.mrb[0].mxu0 %v317
    %v706 = vpop.f32.mrb[0].mxu0
    %v707 = vadd.f32 %v622, %v706
    %v708 = vpop.f32.mrb[0].mxu0
    %v709 = vpop.f32.mrb[0].mxu0
    %v710 = vadd.f32 %v622, %v709
    %v711 = vpop.f32.mrb[0].mxu0
    %712 = vmatprep.mubr.bf16.mxu0 0
    %713 = vmatmul.mubr.bf16.gmra.mrb[0].mxu0 %v318
    %v714 = vpop.f32.mrb[0].mxu0
    %v715 = vadd.f32 %v622, %v714
    %v716 = vpop.f32.mrb[0].mxu0
    %v717 = vpop.f32.mrb[0].mxu0
    %v718 = vadd.f32 %v622, %v717
    %v719 = vpop.f32.mrb[0].mxu0
    %720 = vdwg.mxu0
    %v721 = vld [vmem:[%s6] sm:$0xff]
    %722 = vmatprep.subr.mxu0 0.0
    %723 = vmatpush1.msra.mxu0 %v659
    %724 = vmatprep.subr.mxu0 0.0
    %725 = vmatpush1.msra.mxu0 %v662
    %726 = vmatprep.subr.mxu0 0.0
    %727 = vmatpush1.msra.mxu0 %v667
    %728 = vmatprep.subr.mxu0 0.0
    %729 = vmatpush1.msra.mxu0 %v670
    %730 = vmatprep.subr.mxu0 0.0
    %731 = vmatpush1.msra.mxu0 %v675
    %732 = vmatprep.subr.mxu0 0.0
    %733 = vmatpush1.msra.mxu0 %v678
    %734 = vmatprep.subr.mxu0 0.0
    %735 = vmatpush1.msra.mxu0 %v683
    %736 = vmatprep.subr.mxu0 0.0
    %737 = vmatpush1.msra.mxu0 %v686
    %738 = vmatprep.subr.mxu0 0.0
    %739 = vmatpush1.msra.mxu0 %v691
    %740 = vmatprep.subr.mxu0 0.0
    %741 = vmatpush1.msra.mxu0 %v694
    %742 = vmatprep.subr.mxu0 0.0
    %743 = vmatpush1.msra.mxu0 %v699
    %744 = vmatprep.subr.mxu0 0.0
    %745 = vmatpush1.msra.mxu0 %v702
    %746 = vmatprep.subr.mxu0 0.0
    %747 = vmatpush1.msra.mxu0 %v707
    %748 = vmatprep.subr.mxu0 0.0
    %749 = vmatpush1.msra.mxu0 %v710
    %750 = vmatprep.subr.mxu0 0.0
    %751 = vmatpush1.msra.mxu0 %v715
    %752 = vmatprep.subr.mxu0 0.0
    %753 = vmatpush1.msra.mxu0 %v718
    %754 = vmatprep.subr.mxu0 0.0
    %755 = vmatpush1.msra.mxu0 0.0
    %756 = vmatprep.subr.mxu0 0.0
    %757 = vmatpush1.msra.mxu0 0.0
    %758 = vmatprep.subr.mxu0 0.0
    %759 = vmatpush1.msra.mxu0 0.0
    %760 = vmatprep.subr.mxu0 0.0
    %761 = vmatpush1.msra.mxu0 0.0
    %762 = vmatprep.subr.mxu0 0.0
    %763 = vmatpush1.msra.mxu0 0.0
    %764 = vmatprep.subr.mxu0 0.0
    %765 = vmatpush1.msra.mxu0 0.0
    %766 = vmatprep.subr.mxu0 0.0
    %767 = vmatpush1.msra.mxu0 0.0
    %768 = vmatprep.subr.mxu0 0.0
    %769 = vmatpush1.msra.mxu0 0.0
    %770 = vmatprep.subr.mxu0 0.0
    %771 = vmatpush1.msra.mxu0 0.0
    %772 = vmatprep.subr.mxu0 0.0
    %773 = vmatpush1.msra.mxu0 0.0
    %774 = vmatprep.subr.mxu0 0.0
    %775 = vmatpush1.msra.mxu0 0.0
    %776 = vmatprep.subr.mxu0 0.0
    %777 = vmatpush1.msra.mxu0 0.0
    %778 = vmatprep.subr.mxu0 0.0
    %779 = vmatpush1.msra.mxu0 0.0
    %780 = vmatprep.subr.mxu0 0.0
    %781 = vmatpush1.msra.mxu0 0.0
    %782 = vmatprep.subr.mxu0 0.0
    %783 = vmatpush1.msra.mxu0 0.0
    %784 = vmatprep.subr.mxu0 0.0
    %785 = vmatpush1.msra.mxu0 0.0
    %786 = vmatprep.mubr.f32.mxu0 0.0
    %787 = vmatmul.mubr.f32.gmra.mrb[0].mxu0 %v721
    %v788 = vpop.f32.mrb[0].mxu0
    %v789 = vadd.f32 0.0, %v788
    %v790 = vpop.f32.mrb[0].mxu0
    %791 = vdwg.mxu0
    %v792 = vld [vmem:[#allocation5] sm:$0xf]
    %v793 = vld [vmem:[#allocation5 + $0x4] sm:$0xf]
    %v794 = vld [vmem:[#allocation5 + $0x8] sm:$0xf]
    %v795 = vld [vmem:[#allocation5 + $0xc] sm:$0xf]
    %v796 = vld [vmem:[#allocation5 + $0x10] sm:$0xf]
    %v797 = vld [vmem:[#allocation5 + $0x14] sm:$0xf]
    %v798 = vld [vmem:[#allocation5 + $0x18] sm:$0xf]
    %v799 = vld [vmem:[#allocation5 + $0x1c] sm:$0xf]
    %v800 = vld [vmem:[#allocation5 + $0x20] sm:$0xf]
    %v801 = vld [vmem:[#allocation5 + $0x24] sm:$0xf]
    %v802 = vld [vmem:[#allocation5 + $0x28] sm:$0xf]
    %v803 = vld [vmem:[#allocation5 + $0x2c] sm:$0xf]
    %v804 = vld [vmem:[#allocation5 + $0x30] sm:$0xf]
    %v805 = vld [vmem:[#allocation5 + $0x34] sm:$0xf]
    %v806 = vld [vmem:[#allocation5 + $0x38] sm:$0xf]
    %v807 = vld [vmem:[#allocation5 + $0x3c] sm:$0xf]
    %v808 = vunpack.c.l.bf16 %v792
    %v809 = vunpack.c.l.bf16 %v793
    %v810 = vunpack.c.l.bf16 %v794
    %v811 = vunpack.c.l.bf16 %v795
    %v812 = vunpack.c.l.bf16 %v796
    %v813 = vunpack.c.l.bf16 %v797
    %v814 = vunpack.c.l.bf16 %v798
    %v815 = vunpack.c.l.bf16 %v799
    %v816 = vunpack.c.l.bf16 %v800
    %v817 = vunpack.c.l.bf16 %v801
    %v818 = vunpack.c.l.bf16 %v802
    %v819 = vunpack.c.l.bf16 %v803
    %v820 = vunpack.c.l.bf16 %v804
    %v821 = vunpack.c.l.bf16 %v805
    %v822 = vunpack.c.l.bf16 %v806
    %v823 = vunpack.c.l.bf16 %v807
    %v824 = vld [vmem:[%s8] sm:$0x1]
    %v826 = vlaneseq
    %v827 = vshrl.u32 %v826, 7
    %v828 = vsub.s32 0, %v827
    %v829 = vrot.slane %v824, %v828
    %831 = vmatprep.subr.mxu0 0.0
    %832 = vmatpush1.msra.mxu0 %v808
    %833 = vmatprep.subr.mxu0 0.0
    %834 = vmatpush1.msra.mxu0 %v809
    %835 = vmatprep.subr.mxu0 0.0
    %836 = vmatpush1.msra.mxu0 %v810
    %837 = vmatprep.subr.mxu0 0.0
    %838 = vmatpush1.msra.mxu0 %v811
    %839 = vmatprep.subr.mxu0 0.0
    %840 = vmatpush1.msra.mxu0 %v812
    %841 = vmatprep.subr.mxu0 0.0
    %842 = vmatpush1.msra.mxu0 %v813
    %843 = vmatprep.subr.mxu0 0.0
    %844 = vmatpush1.msra.mxu0 %v814
    %845 = vmatprep.subr.mxu0 0.0
    %846 = vmatpush1.msra.mxu0 %v815
    %847 = vmatprep.subr.mxu0 0.0
    %848 = vmatpush1.msra.mxu0 %v816
    %849 = vmatprep.subr.mxu0 0.0
    %850 = vmatpush1.msra.mxu0 %v817
    %851 = vmatprep.subr.mxu0 0.0
    %852 = vmatpush1.msra.mxu0 %v818
    %853 = vmatprep.subr.mxu0 0.0
    %854 = vmatpush1.msra.mxu0 %v819
    %855 = vmatprep.subr.mxu0 0.0
    %856 = vmatpush1.msra.mxu0 %v820
    %857 = vmatprep.subr.mxu0 0.0
    %858 = vmatpush1.msra.mxu0 %v821
    %859 = vmatprep.subr.mxu0 0.0
    %860 = vmatpush1.msra.mxu0 %v822
    %861 = vmatprep.subr.mxu0 0.0
    %862 = vmatpush1.msra.mxu0 %v823
    %863 = vmatprep.subr.mxu0 0.0
    %864 = vmatpush1.msra.mxu0 0.0
    %865 = vmatprep.subr.mxu0 0.0
    %866 = vmatpush1.msra.mxu0 0.0
    %867 = vmatprep.subr.mxu0 0.0
    %868 = vmatpush1.msra.mxu0 0.0
    %869 = vmatprep.subr.mxu0 0.0
    %870 = vmatpush1.msra.mxu0 0.0
    %871 = vmatprep.subr.mxu0 0.0
    %872 = vmatpush1.msra.mxu0 0.0
    %873 = vmatprep.subr.mxu0 0.0
    %874 = vmatpush1.msra.mxu0 0.0
    %875 = vmatprep.subr.mxu0 0.0
    %876 = vmatpush1.msra.mxu0 0.0
    %877 = vmatprep.subr.mxu0 0.0
    %878 = vmatpush1.msra.mxu0 0.0
    %879 = vmatprep.subr.mxu0 0.0
    %880 = vmatpush1.msra.mxu0 0.0
    %881 = vmatprep.subr.mxu0 0.0
    %882 = vmatpush1.msra.mxu0 0.0
    %883 = vmatprep.subr.mxu0 0.0
    %884 = vmatpush1.msra.mxu0 0.0
    %885 = vmatprep.subr.mxu0 0.0
    %886 = vmatpush1.msra.mxu0 0.0
    %887 = vmatprep.subr.mxu0 0.0
    %888 = vmatpush1.msra.mxu0 0.0
    %889 = vmatprep.subr.mxu0 0.0
    %890 = vmatpush1.msra.mxu0 0.0
    %891 = vmatprep.subr.mxu0 0.0
    %892 = vmatpush1.msra.mxu0 0.0
    %893 = vmatprep.subr.mxu0 0.0
    %894 = vmatpush1.msra.mxu0 0.0
    %895 = vmatprep.mubr.f32.mxu0 0.0
    %896 = vmatmul.mubr.f32.gmra.mrb[0].mxu0 %v789
    %v897 = vpop.f32.mrb[0].mxu0
    %v898 = vadd.f32 %v829, %v897
    %v899 = vpop.f32.mrb[0].mxu0
    %900 = vdwg.mxu0
    %901 = vst [vmem:[#allocation7] sm:$0xff] %v898
    // Predicated region
    $region46: #{tpu_custom_call.1} parent=1 // pred_check
      _
    $region47: #{tpu_custom_call.1} parent=1 // pred_check_branch
      %903 = sbr.rel (0) target = $region49
    $region48: #{tpu_custom_call.1} parent=1 // pred_region
      %s905 = ssub.s32 128, 128
      %906 = vsyncadd [#allocation4], %s905
      %s908 = sshll.u32 [#allocation7], 4
      %s909 = int_to_ptr.vmem [resolvable:$true] %s908
      %911 = dma.vmem_to_hbm [thread:$0]  %s909, 128, %s9, [#allocation4]
    $region49: #{tpu_custom_call.1} parent=1 // pred_fallthru
      _
    // Predicated region
    $region50: #{tpu_custom_call.1} parent=1 // pred_check
      _
    $region51: #{tpu_custom_call.1} parent=1 // pred_check_branch
      %913 = sbr.rel (0) target = $region53
    $region52: #{tpu_custom_call.1} parent=1 // pred_region
      %914 = dma.done [#allocation4], 128
    $region53: #{tpu_custom_call.1} parent=1 // pred_fallthru
      _
    %915 = vsyncpa [#allocation3], 1
    %916 = vsyncpa [#allocation6], 1
    %917 = vsyncpa [#allocation4], 1

</llo_original>
